<compile_context>
chip_gen: v5e
topology: v5e:2x2
jax: 0.10.0
libtpu: 0.0.40
codegen_flags: <defaults>
</compile_context>

<pallas_src>
import functools

import jax
import jax.numpy as jnp
from jax.experimental import pallas as pl
from jax.experimental.pallas import tpu as pltpu

n_embd = 32
vocab_size = 65   # e.g. tiny-shakespeare character vocab

LANE = 128        # TPU lane width


def _round_up(x, m):
    return (x + m - 1) // m * m


def _fused_logits(idx_ref, fused_ref, *, seq_len, n_vocab):
    """One MXU matmul: two-hot(idx, V+pos) @ fused_table -> (tile, Vp) f32."""
    tile = idx_ref.shape[0]
    kp = fused_ref.shape[0]
    pid = pl.program_id(0)

    col = jax.lax.broadcasted_iota(jnp.int32, (tile, kp), 1)
    row = jax.lax.broadcasted_iota(jnp.int32, (tile, kp), 0)
    pos = (pid * tile + row) % seq_len                 # position of each row, in-kernel

    two_hot = jnp.logical_or(col == idx_ref[...],      # token row of fused table
                             col == n_vocab + pos)     # position row of fused table
    two_hot = two_hot.astype(fused_ref.dtype)
    return jnp.dot(two_hot, fused_ref[...], preferred_element_type=jnp.float32)


def _logits_kernel(idx_ref, fused_ref, out_ref, *, seq_len, n_vocab):
    out_ref[...] = _fused_logits(idx_ref, fused_ref,
                                 seq_len=seq_len, n_vocab=n_vocab)


def _logits_loss_kernel(idx_ref, tgt_ref, fused_ref, out_ref, nll_ref, *,
                        seq_len, n_vocab):
    logits = _fused_logits(idx_ref, fused_ref, seq_len=seq_len, n_vocab=n_vocab)
    out_ref[...] = logits

    tile, vp = logits.shape
    col = jax.lax.broadcasted_iota(jnp.int32, (tile, vp), 1)
    valid = col < n_vocab                               # mask the lane padding
    masked = jnp.where(valid, logits, -1e30)

    m = jnp.max(masked, axis=-1, keepdims=True)
    lse = m + jnp.log(jnp.sum(jnp.exp(masked - m), axis=-1, keepdims=True))
    tgt_logit = jnp.sum(jnp.where(col == tgt_ref[...], logits, 0.0),
                        axis=-1, keepdims=True)
    nll_ref[...] = lse - tgt_logit                      # per-row cross-entropy


def bigram_forward(idx, tok_emb, pos_emb, lm_w, lm_b, targets=None, *,
                   tile_bt=256, table_dtype=jnp.float32):
    """JAX/Pallas equivalent of BigramLanguageModel.forward.

    idx:     (B, T) int32
    tok_emb: (V, E) f32   pos_emb: (V, E) f32   (PyTorch nn.Embedding layouts)
    lm_w:    (V, E) f32   (PyTorch nn.Linear weight layout)   lm_b: (V,) f32
    returns (logits, loss):
      targets is None -> logits (B, T, V), loss None
      otherwise       -> logits (B*T, V),  scalar loss   (matches the module)
    """
    B, T = idx.shape
    V, E = tok_emb.shape
    assert T <= pos_emb.shape[0], "T must not exceed the position table"
    BT = B * T

    vp = _round_up(V, LANE)                 # padded vocab (N dim / lane-dense out)
    kp = _round_up(V + T, LANE)             # padded K dim of the fused table
    tile = min(tile_bt, _round_up(BT, 8))   # rows per grid step (>=8, <=256)
    bt_pad = _round_up(BT, tile)
    n_tiles = bt_pad // tile

    # Parameter-only precompute (re-done only when weights / T change): fold the
    # two embedding gathers + lm head into one logit table.
    tok_logits = tok_emb @ lm_w.T + lm_b[None, :]        # (V, V)
    pos_logits = pos_emb[:T] @ lm_w.T                    # (T, V)
    fused = jnp.zeros((kp, vp), dtype=table_dtype)
    fused = fused.at[:V, :V].set(tok_logits.astype(table_dtype))
    fused = fused.at[V:V + T, :V].set(pos_logits.astype(table_dtype))

    idx_flat = idx.reshape(BT).astype(jnp.int32)
    idx_flat = jnp.pad(idx_flat, (0, bt_pad - BT)).reshape(bt_pad, 1)

    row_spec = lambda: pl.BlockSpec((tile, 1), lambda i: (i, 0))
    fused_spec = pl.BlockSpec((kp, vp), lambda i: (0, 0))       # resident across grid
    out_spec = pl.BlockSpec((tile, vp), lambda i: (i, 0))       # lane-dense stores
    cparams = pltpu.CompilerParams(dimension_semantics=("parallel",))

    if targets is None:
        kernel = functools.partial(_logits_kernel, seq_len=T, n_vocab=V)
        logits_pad = pl.pallas_call(
            kernel,
            out_shape=jax.ShapeDtypeStruct((bt_pad, vp), jnp.float32),
            grid=(n_tiles,),
            in_specs=[row_spec(), fused_spec],
            out_specs=out_spec,
            compiler_params=cparams,
        )(idx_flat, fused)
        logits = logits_pad[:BT, :V].reshape(B, T, V)
        return logits, None

    tgt_flat = targets.reshape(BT).astype(jnp.int32)
    tgt_flat = jnp.pad(tgt_flat, (0, bt_pad - BT)).reshape(bt_pad, 1)
    kernel = functools.partial(_logits_loss_kernel, seq_len=T, n_vocab=V)
    logits_pad, nll_pad = pl.pallas_call(
        kernel,
        out_shape=(jax.ShapeDtypeStruct((bt_pad, vp), jnp.float32),
                   jax.ShapeDtypeStruct((bt_pad, 1), jnp.float32)),
        grid=(n_tiles,),
        in_specs=[row_spec(), row_spec(), fused_spec],
        out_specs=(out_spec, pl.BlockSpec((tile, 1), lambda i: (i, 0))),
        compiler_params=cparams,
    )(idx_flat, tgt_flat, fused)

    logits = logits_pad[:BT, :V]                 # (B*T, V), as in the PyTorch module
    loss = jnp.mean(nll_pad[:BT, 0])             # padded rows excluded from the mean
    return logits, loss


# TODO(synk): generate() (autoregressive multinomial sampling loop) is host-side
# control flow; it would call bigram_forward per step rather than live in a kernel.


if __name__ == "__main__":
    key = jax.random.PRNGKey(0)
    k_tok, k_pos, k_w, k_b, k_idx, k_tgt = jax.random.split(key, 6)

    B, T = 2, 8
    V, E = vocab_size, n_embd

    # Deterministic parameter init (shapes follow the nn.Module __init__).
    tok_emb = jax.random.normal(k_tok, (V, E), dtype=jnp.float32)
    pos_emb = jax.random.normal(k_pos, (V, E), dtype=jnp.float32)
    lm_w = jax.random.normal(k_w, (V, E), dtype=jnp.float32) * (1.0 / jnp.sqrt(E))
    lm_b = jax.random.normal(k_b, (V,), dtype=jnp.float32) * 0.01

    idx = jax.random.randint(k_idx, (B, T), 0, V, dtype=jnp.int32)
    targets = jax.random.randint(k_tgt, (B, T), 0, V, dtype=jnp.int32)

    # targets=None path -> logits (B, T, V), loss None.
    logits, loss = bigram_forward(idx, tok_emb, pos_emb, lm_w, lm_b, targets=None)
    logits = jax.block_until_ready(logits)
    assert logits.shape == (B, T, V) and loss is None

    # with-targets path -> logits (B*T, V) + scalar cross-entropy (fused in-kernel).
    logits2, loss2 = bigram_forward(idx, tok_emb, pos_emb, lm_w, lm_b, targets=targets)
    jax.block_until_ready((logits2, loss2))
    assert logits2.shape == (B * T, V)

    # Pure-JAX reference checks.
    ref = (tok_emb[idx] + pos_emb[jnp.arange(T)][None, :, :]) @ lm_w.T + lm_b
    assert jnp.allclose(logits, ref, atol=1e-4, rtol=1e-4)
    assert jnp.allclose(logits2, ref.reshape(B * T, V), atol=1e-4, rtol=1e-4)

    ref_logp = jax.nn.log_softmax(ref.reshape(B * T, V), axis=-1)
    ref_loss = -jnp.mean(ref_logp[jnp.arange(B * T), targets.reshape(B * T)])
    assert jnp.allclose(loss2, ref_loss, atol=1e-4, rtol=1e-4)

    print("KERNEL_OK")
</pallas_src>

<mosaic_0001>
module attributes {stable_mosaic.version = 11 : i64} {
  func.func @_logits_kernel(%arg0: i32, %arg1: memref<16x1xi32, #tpu.memory_space<vmem>>, %arg2: memref<128x128xf32, #tpu.memory_space<vmem>>, %arg3: memref<16x128xf32, #tpu.memory_space<vmem>>) attributes {dimension_semantics = [#tpu.dimension_semantics<parallel>], iteration_bounds = array<i64: 1>, scalar_prefetch = 0 : i64, scratch_operands = 0 : i64, tpu.core_type = #tpu.core_type<tc>, window_params = [{transform_indices = @transform_0, window_bounds = array<i64: 16, 1>}, {pipeline_mode = #tpu.pipeline_mode<synchronous>, transform_indices = @transform_1, window_bounds = array<i64: 128, 128>}, {transform_indices = @transform_2, window_bounds = array<i64: 16, 128>}]} {
    %0 = tpu.iota {dimensions = array<i32: 1>} : vector<16x128xi32>
    %1 = tpu.iota {dimensions = array<i32: 0>} : vector<16x128xi32>
    %c16_i32 = arith.constant 16 : i32
    %2 = arith.muli %arg0, %c16_i32 : i32
    %3 = vector.broadcast %2 : i32 to vector<16x128xi32>
    %4 = arith.addi %3, %1 : vector<16x128xi32>
    %c8_i32 = arith.constant 8 : i32
    %c0_i32 = arith.constant 0 : i32
    %5 = arith.cmpi eq, %c8_i32, %c0_i32 : i32
    %c1_i32 = arith.constant 1 : i32
    %6 = arith.select %5, %c1_i32, %c8_i32 : i32
    %7 = vector.broadcast %6 : i32 to vector<16x128xi32>
    %8 = arith.remsi %4, %7 : vector<16x128xi32>
    %c0_i32_0 = arith.constant 0 : i32
    %9 = vector.broadcast %c0_i32_0 : i32 to vector<16x128xi32>
    %10 = arith.cmpi ne, %8, %9 : vector<16x128xi32>
    %c0_i32_1 = arith.constant 0 : i32
    %11 = vector.broadcast %c0_i32_1 : i32 to vector<16x128xi32>
    %12 = arith.cmpi slt, %8, %11 : vector<16x128xi32>
    %c0_i32_2 = arith.constant 0 : i32
    %13 = arith.cmpi slt, %6, %c0_i32_2 : i32
    %14 = vector.broadcast %13 : i1 to vector<16x128xi1>
    %15 = vector.broadcast %14 : vector<16x128xi1> to vector<16x128xi1>
    %16 = arith.xori %12, %15 : vector<16x128xi1>
    %17 = arith.andi %16, %10 : vector<16x128xi1>
    %18 = vector.broadcast %6 : i32 to vector<16x128xi32>
    %19 = arith.addi %8, %18 : vector<16x128xi32>
    %20 = arith.select %17, %19, %8 : vector<16x128xi1>, vector<16x128xi32>
    %c0 = arith.constant 0 : index
    %c0_3 = arith.constant 0 : index
    %21 = vector.load %arg1[%c0, %c0_3] : memref<16x1xi32, #tpu.memory_space<vmem>>, vector<16x1xi32>
    %22 = vector.broadcast %21 : vector<16x1xi32> to vector<16x128xi32>
    %23 = arith.cmpi eq, %0, %22 : vector<16x128xi32>
    %c65_i32 = arith.constant 65 : i32
    %24 = vector.broadcast %c65_i32 : i32 to vector<16x128xi32>
    %25 = arith.addi %24, %20 : vector<16x128xi32>
    %26 = arith.cmpi eq, %0, %25 : vector<16x128xi32>
    %27 = arith.ori %23, %26 : vector<16x128xi1>
    %28 = arith.extui %27 : vector<16x128xi1> to vector<16x128xi32>
    %29 = arith.sitofp %28 : vector<16x128xi32> to vector<16x128xf32>
    %c0_4 = arith.constant 0 : index
    %c0_5 = arith.constant 0 : index
    %30 = vector.load %arg2[%c0_4, %c0_5] : memref<128x128xf32, #tpu.memory_space<vmem>>, vector<128x128xf32>
    %cst = arith.constant dense<0.000000e+00> : vector<16x128xf32>
    %31 = tpu.matmul %29, %30, %cst {dimension_numbers = #tpu.dot_dimension_numbers<[1], [0], [0], [1], [0, 0, 1, 1], [], []>} : vector<16x128xf32>, vector<128x128xf32>, vector<16x128xf32> -> vector<16x128xf32>
    %c0_6 = arith.constant 0 : index
    %c0_7 = arith.constant 0 : index
    %32 = vector.load %arg3[%c0_6, %c0_7] : memref<16x128xf32, #tpu.memory_space<vmem>>, vector<16x128xf32>
    tpu.vector_store %arg3[%c0_6, %c0_7], %31 {strides = array<i32>} : memref<16x128xf32, #tpu.memory_space<vmem>>, vector<16x128xf32>,
    return
  }
  func.func @transform_0(%arg0: i32) -> (i32, i32) {
    %c0_i32 = arith.constant 0 : i32
    %c0_i32_0 = arith.constant 0 : i32
    return %arg0, %c0_i32 : i32, i32
  }
  func.func @transform_1(%arg0: i32) -> (i32, i32) {
    %c0_i32 = arith.constant 0 : i32
    %c0_i32_0 = arith.constant 0 : i32
    %c0_i32_1 = arith.constant 0 : i32
    return %c0_i32, %c0_i32_0 : i32, i32
  }
  func.func @transform_2(%arg0: i32) -> (i32, i32) {
    %c0_i32 = arith.constant 0 : i32
    %c0_i32_0 = arith.constant 0 : i32
    return %arg0, %c0_i32 : i32, i32
  }
}

</mosaic_0001>

<llo_original>
// kernel: tpu_custom_call.1
$region0: #{tpu_custom_call.1}
  #allocation0 [shape = 'u32[]', space=smem, size = 0x4, offset = 0x4, fixed_abs, tag = 'smem constant byte address 0x4 - core index']
  #allocation1 [shape = 'u32[72,128]{1,0:T(1,128)}', space=vmem, size = 0x9000, scoped, tag = 'internal scratch']
  %s0 = inlined_call_operand.vmem [shape: s32[16,1], index: 0, kind: input, shape index: {}]
  %s1 = inlined_call_operand.hbm [shape: f32[128,128], index: 1, kind: input, shape index: {}]
  %s2 = inlined_call_operand.hbm [shape: f32[16,128], index: 2, kind: output, shape index: {}]
  %s3 = sld [smem:[#allocation0]]
  $region22: #{tpu_custom_call.1} parent=0
    _
  %s5 = ssub.s32 1, %s3
  %s6 = scalar_select 0, %s5, %s3
  $region1: #{tpu_custom_call.1} parent=0
    #allocation2 [shape = 'u8[65536]{0}', space=vmem, size = 0x10000, scoped, tag = 'input window, operand 1, single buffered']
    #allocation3 [shape = 's32[1]{0}', space=sflag, size = 0x4, scoped, tag = 'scoped memory for tpu_custom_call.1']
    #allocation4 [shape = 's32[1]{0}', space=sflag, size = 0x4, scoped, tag = 'scoped memory for tpu_custom_call.1']
    #allocation5 [shape = 'u8[8192]{0}', space=vmem, size = 0x2000, scoped, tag = 'output window, operand 0, single buffered']
    %7 = vsyncpa [#allocation3], 0
    %8 = vsyncpa [#allocation4], 0
    // Predicated region
    $region2: #{tpu_custom_call.1} parent=1 // pred_check
      _
    $region3: #{tpu_custom_call.1} parent=1 // pred_check_branch
      %10 = sbr.rel (0) target = $region5
    $region4: #{tpu_custom_call.1} parent=1 // pred_region
      _
    $region5: #{tpu_custom_call.1} parent=1 // pred_fallthru
      _
    // Predicated region
    $region6: #{tpu_custom_call.1} parent=1 // pred_check
      _
    $region7: #{tpu_custom_call.1} parent=1 // pred_check_branch
      %12 = sbr.rel (0) target = $region9
    $region8: #{tpu_custom_call.1} parent=1 // pred_region
      %14 = vsyncadd [#allocation3], 0
      %s15 = sshll.u32 %s1, 4
      %s16 = int_to_ptr.hbm [resolvable:$true] %s15
      %s17 = sshll.u32 [#allocation2], 4
      %s18 = int_to_ptr.vmem [resolvable:$true] %s17
      %23 = dma.hbm_to_vmem [thread:$0]  %s16, 2048, %s18, [#allocation3], 128, 128, 8
    $region9: #{tpu_custom_call.1} parent=1 // pred_fallthru
      _
    // Predicated region
    $region10: #{tpu_custom_call.1} parent=1 // pred_check
      _
    $region11: #{tpu_custom_call.1} parent=1 // pred_check_branch
      %25 = sbr.rel (0) target = $region13
    $region12: #{tpu_custom_call.1} parent=1 // pred_region
      %27 = dma.done [#allocation3], 2048
    $region13: #{tpu_custom_call.1} parent=1 // pred_fallthru
      _
    %v28 = vlaneseq
    %v29 = vand.u32 %v28, 127
    %v30 = vlaneseq
    %v31 = vshrl.u32 %v30, 7
    %v32 = vadd.s32 %v31, 8
    %s33 = smul.u32 0, 16
    %v34 = vstv %s33
    %v35 = vadd.s32 %v34, %v31
    %v36 = vadd.s32 %v34, %v32
    %vm37 = vcmp.lt.s32.totalorder %v35, 0
    %v38 = vsub.s32 0, %v35
    %v39 = vsel %vm37, %v38, %v35
    %v40 = vshrl.u32 %v39, 3
    %v41 = vand.u32 %v39, 7
    %v42 = vsub.s32 0, %v41
    %v43 = vsel %vm37, %v42, %v41
    %vm44 = vcmp.lt.s32.totalorder %v36, 0
    %v45 = vsub.s32 0, %v36
    %v46 = vsel %vm44, %v45, %v36
    %v47 = vshrl.u32 %v46, 3
    %v48 = vand.u32 %v46, 7
    %v49 = vsub.s32 0, %v48
    %v50 = vsel %vm44, %v49, %v48
    %vm51 = vcmp.ne.s32.totalorder %v43, 0
    %vm52 = vcmp.ne.s32.totalorder %v50, 0
    %vm53 = vcmp.lt.s32.totalorder %v43, 0
    %vm54 = vcmp.lt.s32.totalorder %v50, 0
    %vm55 = vmand %vm53, %vm51
    %vm56 = vmand %vm54, %vm52
    %v57 = vadd.s32 %v43, 8
    %v58 = vadd.s32 %v50, 8
    %v59 = vsel %vm55, %v57, %v43
    %v60 = vsel %vm56, %v58, %v50
    %v61 = vld [vmem:[%s0] sm:$0xff]
    %v62 = vld [vmem:[%s0 + $0x8] sm:$0xff]
    %63 = vset.pattern.permute.xlu0 0
    %64 = vperm.xlu0 %63, %v61
    %v65 = vpop.permute.xlu0 %64
    %66 = vset.pattern.permute.xlu0 0
    %67 = vperm.xlu0 %66, %v62
    %v68 = vpop.permute.xlu0 %67
    %vm69 = vcmp.eq.s32.totalorder %v29, %v65
    %vm70 = vcmp.eq.s32.totalorder %v29, %v68
    %v71 = vadd.s32 %v59, 65
    %v72 = vadd.s32 %v60, 65
    %vm73 = vcmp.eq.s32.totalorder %v29, %v71
    %vm74 = vcmp.eq.s32.totalorder %v29, %v72
    %vm75 = vmor %vm69, %vm73
    %vm76 = vmor %vm70, %vm74
    %v77 = vsel %vm75, 1, 0
    %v78 = vsel %vm76, 1, 0
    %v79 = vcvt.s32.f32 %v77
    %v80 = vcvt.s32.f32 %v78
    %v81 = vld [vmem:[#allocation2] sm:$0xff]
    %v82 = vld [vmem:[#allocation2 + $0x8] sm:$0xff]
    %v83 = vld [vmem:[#allocation2 + $0x10] sm:$0xff]
    %v84 = vld [vmem:[#allocation2 + $0x18] sm:$0xff]
    %v85 = vld [vmem:[#allocation2 + $0x20] sm:$0xff]
    %v86 = vld [vmem:[#allocation2 + $0x28] sm:$0xff]
    %v87 = vld [vmem:[#allocation2 + $0x30] sm:$0xff]
    %v88 = vld [vmem:[#allocation2 + $0x38] sm:$0xff]
    %v89 = vld [vmem:[#allocation2 + $0x40] sm:$0xff]
    %v90 = vld [vmem:[#allocation2 + $0x48] sm:$0xff]
    %v91 = vld [vmem:[#allocation2 + $0x50] sm:$0xff]
    %v92 = vld [vmem:[#allocation2 + $0x58] sm:$0xff]
    %v93 = vld [vmem:[#allocation2 + $0x60] sm:$0xff]
    %v94 = vld [vmem:[#allocation2 + $0x68] sm:$0xff]
    %v95 = vld [vmem:[#allocation2 + $0x70] sm:$0xff]
    %v96 = vld [vmem:[#allocation2 + $0x78] sm:$0xff]
    %97 = vmatpush.msra.mxu0 %v96
    %98 = vmatpush.msra.mxu0 %v95
    %99 = vmatpush.msra.mxu0 %v94
    %100 = vmatpush.msra.mxu0 %v93
    %101 = vmatpush.msra.mxu0 %v92
    %102 = vmatpush.msra.mxu0 %v91
    %103 = vmatpush.msra.mxu0 %v90
    %104 = vmatpush.msra.mxu0 %v89
    %105 = vmatpush.msra.mxu0 %v88
    %106 = vmatpush.msra.mxu0 %v87
    %107 = vmatpush.msra.mxu0 %v86
    %108 = vmatpush.msra.mxu0 %v85
    %109 = vmatpush.msra.mxu0 %v84
    %110 = vmatpush.msra.mxu0 %v83
    %111 = vmatpush.msra.mxu0 %v82
    %112 = vmatpush.msra.mxu0 %v81
    %113 = vmatmul.f32.gmra.mxu0 %v79
    %v114 = vpop.f32.mrf.mxu0
    %v115 = vadd.f32 0.0, %v114
    %116 = vmatmul.f32.gmra.mxu0 %v80
    %v117 = vpop.f32.mrf.mxu0
    %v118 = vadd.f32 0.0, %v117
    %119 = vdwg.mxu0
    %120 = vst [vmem:[#allocation5] sm:$0xff] %v115
    %121 = vst [vmem:[#allocation5 + $0x8] sm:$0xff] %v118
    // Predicated region
    $region14: #{tpu_custom_call.1} parent=1 // pred_check
      _
    $region15: #{tpu_custom_call.1} parent=1 // pred_check_branch
      %123 = sbr.rel (0) target = $region17
    $region16: #{tpu_custom_call.1} parent=1 // pred_region
      %125 = vsyncadd [#allocation4], 0
      %s126 = sshll.u32 [#allocation5], 4
      %s127 = int_to_ptr.vmem [resolvable:$true] %s126
      %s128 = sshll.u32 %s2, 4
      %s129 = int_to_ptr.hbm [resolvable:$true] %s128
      %134 = dma.vmem_to_hbm [thread:$0]  %s127, 256, %s129, [#allocation4], 128, 128, 8
    $region17: #{tpu_custom_call.1} parent=1 // pred_fallthru
      _
    // Predicated region
    $region18: #{tpu_custom_call.1} parent=1 // pred_check
      _
    $region19: #{tpu_custom_call.1} parent=1 // pred_check_branch
      %136 = sbr.rel (0) target = $region21
    $region20: #{tpu_custom_call.1} parent=1 // pred_region
      %138 = dma.done [#allocation4], 256
    $region21: #{tpu_custom_call.1} parent=1 // pred_fallthru
      _
    %139 = vsyncpa [#allocation3], 1
    %140 = vsyncpa [#allocation4], 1

</llo_original>
